<compile_context>
chip_gen: v7x
topology: tpu7x:2x2x1
jax: 0.10.0
libtpu: 0.0.40
codegen_flags: <defaults>
</compile_context>

<pallas_src>
import functools

import jax
import jax.numpy as jnp
from jax.experimental import pallas as pl
from jax.experimental.pallas import tpu as pltpu


def _round_up(x, m):
    return (x + m - 1) // m * m


def _generator_kernel(x_ref, w1_ref, b1_ref, w2_ref, b2_ref, w3_ref, b3_ref,
                      o_ref):
    # Layer 1: Linear + ReLU  (bf16 MXU operands, f32 accumulate + epilogue)
    h1 = jnp.dot(x_ref[...], w1_ref[...], preferred_element_type=jnp.float32)
    h1 = jnp.maximum(h1 + b1_ref[...], 0.0)

    # Layer 2: Linear + ReLU
    h2 = jnp.dot(h1.astype(w2_ref.dtype), w2_ref[...],
                 preferred_element_type=jnp.float32)
    h2 = jnp.maximum(h2 + b2_ref[...], 0.0)

    # Layer 3: Linear + Tanh (lane-dense N=128 output block)
    h3 = jnp.dot(h2.astype(w3_ref.dtype), w3_ref[...],
                 preferred_element_type=jnp.float32)
    o_ref[...] = jnp.tanh(h3 + b3_ref[...]).astype(o_ref.dtype)


@functools.partial(jax.jit, static_argnames=("batch_tile", "use_bf16"))
def generator_forward(x, params, *, batch_tile=512, use_bf16=True):
    """Runs the fused Generator MLP as a single Pallas kernel."""
    w1, b1, w2, b2, w3, b3 = params
    B, in_dim = x.shape
    h1_dim = w1.shape[1]
    h2_dim = w2.shape[1]
    out_dim = w3.shape[1]

    mxu_dtype = jnp.bfloat16 if use_bf16 else jnp.float32
    sub = 16 if use_bf16 else 8          # sublane tile for the MXU dtype

    # ---- Lane-dense padding (one-time wrapper cost, fused by XLA) ----
    in_p = _round_up(in_dim, 128)
    out_p = _round_up(out_dim, 128)
    bt = max(sub, min(batch_tile, _round_up(B, sub)))
    bt = _round_up(bt, sub)
    B_p = _round_up(B, bt)

    x_p = jnp.zeros((B_p, in_p), mxu_dtype).at[:B, :in_dim].set(
        x.astype(mxu_dtype))
    w1_p = jnp.zeros((in_p, h1_dim), mxu_dtype).at[:in_dim, :].set(
        w1.astype(mxu_dtype))
    w2_p = w2.astype(mxu_dtype)
    w3_p = jnp.zeros((h2_dim, out_p), mxu_dtype).at[:, :out_dim].set(
        w3.astype(mxu_dtype))
    b1_p = b1.astype(jnp.float32)
    b2_p = b2.astype(jnp.float32)
    b3_p = jnp.zeros((1, out_p), jnp.float32).at[:, :out_dim].set(
        b3.astype(jnp.float32))

    grid = (B_p // bt,)

    # Weights / biases are resident across all grid steps (constant index_map).
    def w_spec(shape):
        return pl.BlockSpec(shape, lambda i: (0, 0))

    def nbytes(shape, dtype):
        n = 1
        for s in shape:
            n *= s
        return n * jnp.dtype(dtype).itemsize

    cost = pl.CostEstimate(
        flops=2 * B_p * (in_p * h1_dim + h1_dim * h2_dim + h2_dim * out_p),
        transcendentals=B_p * out_p,
        bytes_accessed=(nbytes((B_p, in_p), mxu_dtype)
                        + nbytes((in_p, h1_dim), mxu_dtype)
                        + nbytes((h1_dim, h2_dim), mxu_dtype)
                        + nbytes((h2_dim, out_p), mxu_dtype)
                        + nbytes((1, h1_dim), jnp.float32)
                        + nbytes((1, h2_dim), jnp.float32)
                        + nbytes((1, out_p), jnp.float32)
                        + nbytes((B_p, out_p), x.dtype)),
    )

    out_padded = pl.pallas_call(
        _generator_kernel,
        out_shape=jax.ShapeDtypeStruct((B_p, out_p), x.dtype),
        grid_spec=pltpu.PrefetchScalarGridSpec(
            num_scalar_prefetch=0,
            grid=grid,
            in_specs=[
                pl.BlockSpec((bt, in_p), lambda i: (i, 0)),
                w_spec((in_p, h1_dim)),
                w_spec((1, h1_dim)),
                w_spec((h1_dim, h2_dim)),
                w_spec((1, h2_dim)),
                w_spec((h2_dim, out_p)),
                w_spec((1, out_p)),
            ],
            out_specs=pl.BlockSpec((bt, out_p), lambda i: (i, 0)),
        ),
        compiler_params=pltpu.CompilerParams(
            dimension_semantics=("parallel",)),
        cost_estimate=cost,
    )(x_p, w1_p, b1_p, w2_p, b2_p, w3_p, b3_p)

    # Strip batch / output-lane padding outside the kernel.
    return out_padded[:B, :out_dim]


def init_generator_params(key, input_dim, output_dim, dtype=jnp.float32):
    """Deterministic init mimicking PyTorch's default Linear init
    (uniform in +-1/sqrt(fan_in)).  Weights stored as (in, out) = W.T."""
    dims = [(input_dim, 128), (128, 256), (256, output_dim)]
    params = []
    for (fan_in, fan_out) in dims:
        key, kw, kb = jax.random.split(key, 3)
        bound = 1.0 / (fan_in ** 0.5)
        w = jax.random.uniform(kw, (fan_in, fan_out), dtype,
                               minval=-bound, maxval=bound)
        b = jax.random.uniform(kb, (1, fan_out), dtype,
                               minval=-bound, maxval=bound)
        params.extend([w, b])
    return tuple(params)


def generator_reference(x, params, cast_dtype=None):
    """Pure-JAX reference (f32 math).  If cast_dtype is given, inputs and
    weights are quantized to it first, mirroring the kernel's MXU operands."""
    w1, b1, w2, b2, w3, b3 = params
    if cast_dtype is not None:
        x = x.astype(cast_dtype).astype(jnp.float32)
        w1 = w1.astype(cast_dtype).astype(jnp.float32)
        w2 = w2.astype(cast_dtype).astype(jnp.float32)
        w3 = w3.astype(cast_dtype).astype(jnp.float32)
    h1 = jnp.maximum(x @ w1 + b1, 0.0)
    h2 = jnp.maximum((h1.astype(cast_dtype).astype(jnp.float32)
                      if cast_dtype is not None else h1) @ w2 + b2, 0.0)
    h2c = (h2.astype(cast_dtype).astype(jnp.float32)
           if cast_dtype is not None else h2)
    return jnp.tanh(h2c @ w3 + b3)


if __name__ == "__main__":
    key = jax.random.PRNGKey(0)
    k_params, k_x = jax.random.split(key)

    batch = 200        # deliberately not a tile multiple -> exercises padding
    input_dim = 16     # latent noise dim
    output_dim = 32    # generated volatility path length
    batch_tile = 128

    params = init_generator_params(k_params, input_dim, output_dim)
    x = jax.random.normal(k_x, (batch, input_dim), dtype=jnp.float32)

    out = generator_forward(x, params, batch_tile=batch_tile, use_bf16=True)
    out = jax.block_until_ready(out)
    assert out.shape == (batch, output_dim)

    # Mirror the kernel's bf16 MXU operands in the reference -> tight check.
    ref_bf16 = generator_reference(x, params, cast_dtype=jnp.bfloat16)
    assert jnp.allclose(out, ref_bf16, atol=2e-3, rtol=0.0), (
        float(jnp.max(jnp.abs(out - ref_bf16))))

    # Loose sanity check against the pure-f32 reference too.
    ref_f32 = generator_reference(x, params)
    assert jnp.allclose(out, ref_f32, atol=1e-1, rtol=0.0), (
        float(jnp.max(jnp.abs(out - ref_f32))))

    print("KERNEL_OK")
</pallas_src>

<mosaic_0001>
module attributes {stable_mosaic.version = 11 : i64} {
  func.func @_generator_kernel(%arg0: i32, %arg1: memref<128x128xbf16, #tpu.memory_space<vmem>>, %arg2: memref<128x128xbf16, #tpu.memory_space<vmem>>, %arg3: memref<1x128xf32, #tpu.memory_space<vmem>>, %arg4: memref<128x256xbf16, #tpu.memory_space<vmem>>, %arg5: memref<1x256xf32, #tpu.memory_space<vmem>>, %arg6: memref<256x128xbf16, #tpu.memory_space<vmem>>, %arg7: memref<1x128xf32, #tpu.memory_space<vmem>>, %arg8: memref<128x128xf32, #tpu.memory_space<vmem>>) attributes {dimension_semantics = [#tpu.dimension_semantics<parallel>], iteration_bounds = array<i64: 2>, scalar_prefetch = 0 : i64, scratch_operands = 0 : i64, tpu.core_type = #tpu.core_type<tc>, window_params = [{transform_indices = @transform_0, window_bounds = array<i64: 128, 128>}, {pipeline_mode = #tpu.pipeline_mode<synchronous>, transform_indices = @transform_1, window_bounds = array<i64: 128, 128>}, {pipeline_mode = #tpu.pipeline_mode<synchronous>, transform_indices = @transform_2, window_bounds = array<i64: 1, 128>}, {pipeline_mode = #tpu.pipeline_mode<synchronous>, transform_indices = @transform_3, window_bounds = array<i64: 128, 256>}, {pipeline_mode = #tpu.pipeline_mode<synchronous>, transform_indices = @transform_4, window_bounds = array<i64: 1, 256>}, {pipeline_mode = #tpu.pipeline_mode<synchronous>, transform_indices = @transform_5, window_bounds = array<i64: 256, 128>}, {pipeline_mode = #tpu.pipeline_mode<synchronous>, transform_indices = @transform_6, window_bounds = array<i64: 1, 128>}, {transform_indices = @transform_7, window_bounds = array<i64: 128, 128>}]} {
    %c0 = arith.constant 0 : index
    %c0_0 = arith.constant 0 : index
    %0 = vector.load %arg1[%c0, %c0_0] : memref<128x128xbf16, #tpu.memory_space<vmem>>, vector<128x128xbf16>
    %c0_1 = arith.constant 0 : index
    %c0_2 = arith.constant 0 : index
    %1 = vector.load %arg2[%c0_1, %c0_2] : memref<128x128xbf16, #tpu.memory_space<vmem>>, vector<128x128xbf16>
    %cst = arith.constant dense<0.000000e+00> : vector<128x128xf32>
    %2 = tpu.matmul %0, %1, %cst {dimension_numbers = #tpu.dot_dimension_numbers<[1], [0], [0], [1], [0, 0, 1, 1], [], []>} : vector<128x128xbf16>, vector<128x128xbf16>, vector<128x128xf32> -> vector<128x128xf32>
    %c0_3 = arith.constant 0 : index
    %c0_4 = arith.constant 0 : index
    %3 = vector.load %arg3[%c0_3, %c0_4] : memref<1x128xf32, #tpu.memory_space<vmem>>, vector<1x128xf32>
    %4 = vector.broadcast %3 : vector<1x128xf32> to vector<128x128xf32>
    %5 = arith.addf %2, %4 : vector<128x128xf32>
    %cst_5 = arith.constant 0.000000e+00 : f32
    %6 = vector.broadcast %cst_5 : f32 to vector<128x128xf32>
    %7 = arith.maximumf %5, %6 : vector<128x128xf32>
    %8 = arith.truncf %7 : vector<128x128xf32> to vector<128x128xbf16>
    %c0_6 = arith.constant 0 : index
    %c0_7 = arith.constant 0 : index
    %9 = vector.load %arg4[%c0_6, %c0_7] : memref<128x256xbf16, #tpu.memory_space<vmem>>, vector<128x256xbf16>
    %cst_8 = arith.constant dense<0.000000e+00> : vector<128x256xf32>
    %10 = tpu.matmul %8, %9, %cst_8 {dimension_numbers = #tpu.dot_dimension_numbers<[1], [0], [0], [1], [0, 0, 1, 1], [], []>} : vector<128x128xbf16>, vector<128x256xbf16>, vector<128x256xf32> -> vector<128x256xf32>
    %c0_9 = arith.constant 0 : index
    %c0_10 = arith.constant 0 : index
    %11 = vector.load %arg5[%c0_9, %c0_10] : memref<1x256xf32, #tpu.memory_space<vmem>>, vector<1x256xf32>
    %12 = vector.broadcast %11 : vector<1x256xf32> to vector<128x256xf32>
    %13 = arith.addf %10, %12 : vector<128x256xf32>
    %cst_11 = arith.constant 0.000000e+00 : f32
    %14 = vector.broadcast %cst_11 : f32 to vector<128x256xf32>
    %15 = arith.maximumf %13, %14 : vector<128x256xf32>
    %16 = arith.truncf %15 : vector<128x256xf32> to vector<128x256xbf16>
    %c0_12 = arith.constant 0 : index
    %c0_13 = arith.constant 0 : index
    %17 = vector.load %arg6[%c0_12, %c0_13] : memref<256x128xbf16, #tpu.memory_space<vmem>>, vector<256x128xbf16>
    %cst_14 = arith.constant dense<0.000000e+00> : vector<128x128xf32>
    %18 = tpu.matmul %16, %17, %cst_14 {dimension_numbers = #tpu.dot_dimension_numbers<[1], [0], [0], [1], [0, 0, 1, 1], [], []>} : vector<128x256xbf16>, vector<256x128xbf16>, vector<128x128xf32> -> vector<128x128xf32>
    %c0_15 = arith.constant 0 : index
    %c0_16 = arith.constant 0 : index
    %19 = vector.load %arg7[%c0_15, %c0_16] : memref<1x128xf32, #tpu.memory_space<vmem>>, vector<1x128xf32>
    %20 = vector.broadcast %19 : vector<1x128xf32> to vector<128x128xf32>
    %21 = arith.addf %18, %20 : vector<128x128xf32>
    %22 = math.tanh %21 : vector<128x128xf32>
    %c0_17 = arith.constant 0 : index
    %c0_18 = arith.constant 0 : index
    %23 = vector.load %arg8[%c0_17, %c0_18] : memref<128x128xf32, #tpu.memory_space<vmem>>, vector<128x128xf32>
    tpu.vector_store %arg8[%c0_17, %c0_18], %22 {strides = array<i32>} : memref<128x128xf32, #tpu.memory_space<vmem>>, vector<128x128xf32>,
    return
  }
  func.func @transform_0(%arg0: i32) -> (i32, i32) {
    %c0_i32 = arith.constant 0 : i32
    %c0_i32_0 = arith.constant 0 : i32
    return %arg0, %c0_i32 : i32, i32
  }
  func.func @transform_1(%arg0: i32) -> (i32, i32) {
    %c0_i32 = arith.constant 0 : i32
    %c0_i32_0 = arith.constant 0 : i32
    %c0_i32_1 = arith.constant 0 : i32
    return %c0_i32, %c0_i32_0 : i32, i32
  }
  func.func @transform_2(%arg0: i32) -> (i32, i32) {
    %c0_i32 = arith.constant 0 : i32
    %c0_i32_0 = arith.constant 0 : i32
    %c0_i32_1 = arith.constant 0 : i32
    return %c0_i32, %c0_i32_0 : i32, i32
  }
  func.func @transform_3(%arg0: i32) -> (i32, i32) {
    %c0_i32 = arith.constant 0 : i32
    %c0_i32_0 = arith.constant 0 : i32
    %c0_i32_1 = arith.constant 0 : i32
    return %c0_i32, %c0_i32_0 : i32, i32
  }
  func.func @transform_4(%arg0: i32) -> (i32, i32) {
    %c0_i32 = arith.constant 0 : i32
    %c0_i32_0 = arith.constant 0 : i32
    %c0_i32_1 = arith.constant 0 : i32
    return %c0_i32, %c0_i32_0 : i32, i32
  }
  func.func @transform_5(%arg0: i32) -> (i32, i32) {
    %c0_i32 = arith.constant 0 : i32
    %c0_i32_0 = arith.constant 0 : i32
    %c0_i32_1 = arith.constant 0 : i32
    return %c0_i32, %c0_i32_0 : i32, i32
  }
  func.func @transform_6(%arg0: i32) -> (i32, i32) {
    %c0_i32 = arith.constant 0 : i32
    %c0_i32_0 = arith.constant 0 : i32
    %c0_i32_1 = arith.constant 0 : i32
    return %c0_i32, %c0_i32_0 : i32, i32
  }
  func.func @transform_7(%arg0: i32) -> (i32, i32) {
    %c0_i32 = arith.constant 0 : i32
    %c0_i32_0 = arith.constant 0 : i32
    return %arg0, %c0_i32 : i32, i32
  }
}

</mosaic_0001>

<llo_original>
// kernel: generator_forward.1
$region0: #{generator_forward.1}
  #allocation0 [shape = 'u32[]', space=smem, size = 0x4, offset = 0x4, fixed_abs, tag = 'smem constant byte address 0x4 - core index']
  #allocation1 [shape = 'u32[144,128]{1,0:T(1,128)}', space=vmem, size = 0x12000, scoped, tag = 'internal scratch']
  %s0 = inlined_call_operand.vmem [shape: bf16[256,128], index: 0, kind: input, shape index: {}]
  %s1 = inlined_call_operand.vmem [shape: bf16[128,128], index: 1, kind: input, shape index: {}]
  %s2 = inlined_call_operand.vmem [shape: f32[1,128], index: 2, kind: input, shape index: {}]
  %s3 = inlined_call_operand.vmem [shape: bf16[128,256], index: 3, kind: input, shape index: {}]
  %s4 = inlined_call_operand.vmem [shape: f32[1,256], index: 4, kind: input, shape index: {}]
  %s5 = inlined_call_operand.vmem [shape: bf16[256,128], index: 5, kind: input, shape index: {}]
  %s6 = inlined_call_operand.vmem [shape: f32[1,128], index: 6, kind: input, shape index: {}]
  %s7 = inlined_call_operand.vmem [shape: f32[256,128], index: 7, kind: output, shape index: {}]
  %s8 = sld [smem:[#allocation0]]
  $region61: #{generator_forward.1} parent=0
    _
  %s10 = ssub.s32 1, %s8
  %s11 = scalar_select 0, %s10, %s8
  loop: start=0, step=1, limit=4
  $region2: #{generator_forward.1} parent=0 // loop_pre_header
    _
  $region3: #{generator_forward.1} parent=0 // loop_header
    %s13 = sphi 0, %s17
    %p14 = scmp.ge.s32.totalorder %s13, 4
    %s23 = sphi 0, %s25
    %s26 = sphi 0, %s23
    %s27 = sphi 0, %s26
    %s43 = sphi 0, %s27
    %s47 = sphi 0, %s47
    %s49 = sphi 0, %s47
    %s50 = sphi 0, %s49
    %s64 = sphi 0, %s50
    %s68 = sphi 0, %s68
    %s70 = sphi 0, %s68
    %s71 = sphi 0, %s70
    %s85 = sphi 0, %s71
    %s89 = sphi 0, %s89
    %s91 = sphi 0, %s89
    %s92 = sphi 0, %s91
    %s106 = sphi 0, %s92
    %s110 = sphi 0, %s110
    %s112 = sphi 0, %s110
    %s113 = sphi 0, %s112
    %s127 = sphi 0, %s113
    %s131 = sphi 0, %s131
    %s133 = sphi 0, %s131
    %s134 = sphi 0, %s133
    %s148 = sphi 0, %s134
    %s152 = sphi 0, %s152
    %s154 = sphi 0, %s152
    %s155 = sphi 0, %s154
    %s169 = sphi 0, %s155
    %s175 = sphi 0, %s177
    %s178 = sphi 0, %s175
    %s179 = sphi 0, %s178
    %s195 = sphi 0, %s179
  $region4: #{generator_forward.1} parent=0 // loop_header_branch
    %16 = sbr.rel (%p14) target = $region8
  $region5: #{generator_forward.1} parent=0 // loop_body
    %s18 = ssub.s32 %s13, 1
    %s19 = ssub.s32 %s13, 2
    %s20 = sadd.s32 %s13, 1
    %s21 = ssub.s32 %s13, %s20
    %p22 = scmp.eq.s32.totalorder %s21, 0
    %s24 = sadd.s32 %s23, 1
    %s25 = scalar_select %p22, %s23, %s24
    %p28 = pneg %p22
    %p29 = scmp.eq.s32.totalorder %s13, 1
    %p30 = por %p28, %p29
    %p31 = scmp.ne.s32.totalorder %s23, %s26
    %p32 = scmp.eq.s32.totalorder %s13, 0
    %p33 = por %p31, %p32
    %p34 = scmp.ne.s32.totalorder %s23, %s26
    %p35 = scmp.eq.s32.totalorder %s18, 1
    %p36 = por %p34, %p35
    %p37 = scmp.ne.s32.totalorder %s26, %s27
    %p38 = scmp.eq.s32.totalorder %s18, 0
    %p39 = por %p37, %p38
    %p40 = scmp.ne.s32.totalorder %s26, %s27
    %p41 = scmp.eq.s32.totalorder %s19, 1
    %p42 = por %p40, %p41
    %p44 = scmp.ne.s32.totalorder %s27, %s43
    %p45 = scmp.eq.s32.totalorder %s19, 0
    %p46 = por %p44, %p45
    %s48 = sadd.s32 %s47, 1
    %p51 = scmp.eq.s32.totalorder %s13, 1
    %p52 = scmp.ne.s32.totalorder %s47, %s49
    %p53 = scmp.eq.s32.totalorder %s13, 0
    %p54 = por %p52, %p53
    %p55 = scmp.ne.s32.totalorder %s47, %s49
    %p56 = scmp.eq.s32.totalorder %s18, 1
    %p57 = por %p55, %p56
    %p58 = scmp.ne.s32.totalorder %s49, %s50
    %p59 = scmp.eq.s32.totalorder %s18, 0
    %p60 = por %p58, %p59
    %p61 = scmp.ne.s32.totalorder %s49, %s50
    %p62 = scmp.eq.s32.totalorder %s19, 1
    %p63 = por %p61, %p62
    %p65 = scmp.ne.s32.totalorder %s50, %s64
    %p66 = scmp.eq.s32.totalorder %s19, 0
    %p67 = por %p65, %p66
    %s69 = sadd.s32 %s68, 1
    %p72 = scmp.eq.s32.totalorder %s13, 1
    %p73 = scmp.ne.s32.totalorder %s68, %s70
    %p74 = scmp.eq.s32.totalorder %s13, 0
    %p75 = por %p73, %p74
    %p76 = scmp.ne.s32.totalorder %s68, %s70
    %p77 = scmp.eq.s32.totalorder %s18, 1
    %p78 = por %p76, %p77
    %p79 = scmp.ne.s32.totalorder %s70, %s71
    %p80 = scmp.eq.s32.totalorder %s18, 0
    %p81 = por %p79, %p80
    %p82 = scmp.ne.s32.totalorder %s70, %s71
    %p83 = scmp.eq.s32.totalorder %s19, 1
    %p84 = por %p82, %p83
    %p86 = scmp.ne.s32.totalorder %s71, %s85
    %p87 = scmp.eq.s32.totalorder %s19, 0
    %p88 = por %p86, %p87
    %s90 = sadd.s32 %s89, 1
    %p93 = scmp.eq.s32.totalorder %s13, 1
    %p94 = scmp.ne.s32.totalorder %s89, %s91
    %p95 = scmp.eq.s32.totalorder %s13, 0
    %p96 = por %p94, %p95
    %p97 = scmp.ne.s32.totalorder %s89, %s91
    %p98 = scmp.eq.s32.totalorder %s18, 1
    %p99 = por %p97, %p98
    %p100 = scmp.ne.s32.totalorder %s91, %s92
    %p101 = scmp.eq.s32.totalorder %s18, 0
    %p102 = por %p100, %p101
    %p103 = scmp.ne.s32.totalorder %s91, %s92
    %p104 = scmp.eq.s32.totalorder %s19, 1
    %p105 = por %p103, %p104
    %p107 = scmp.ne.s32.totalorder %s92, %s106
    %p108 = scmp.eq.s32.totalorder %s19, 0
    %p109 = por %p107, %p108
    %s111 = sadd.s32 %s110, 1
    %p114 = scmp.eq.s32.totalorder %s13, 1
    %p115 = scmp.ne.s32.totalorder %s110, %s112
    %p116 = scmp.eq.s32.totalorder %s13, 0
    %p117 = por %p115, %p116
    %p118 = scmp.ne.s32.totalorder %s110, %s112
    %p119 = scmp.eq.s32.totalorder %s18, 1
    %p120 = por %p118, %p119
    %p121 = scmp.ne.s32.totalorder %s112, %s113
    %p122 = scmp.eq.s32.totalorder %s18, 0
    %p123 = por %p121, %p122
    %p124 = scmp.ne.s32.totalorder %s112, %s113
    %p125 = scmp.eq.s32.totalorder %s19, 1
    %p126 = por %p124, %p125
    %p128 = scmp.ne.s32.totalorder %s113, %s127
    %p129 = scmp.eq.s32.totalorder %s19, 0
    %p130 = por %p128, %p129
    %s132 = sadd.s32 %s131, 1
    %p135 = scmp.eq.s32.totalorder %s13, 1
    %p136 = scmp.ne.s32.totalorder %s131, %s133
    %p137 = scmp.eq.s32.totalorder %s13, 0
    %p138 = por %p136, %p137
    %p139 = scmp.ne.s32.totalorder %s131, %s133
    %p140 = scmp.eq.s32.totalorder %s18, 1
    %p141 = por %p139, %p140
    %p142 = scmp.ne.s32.totalorder %s133, %s134
    %p143 = scmp.eq.s32.totalorder %s18, 0
    %p144 = por %p142, %p143
    %p145 = scmp.ne.s32.totalorder %s133, %s134
    %p146 = scmp.eq.s32.totalorder %s19, 1
    %p147 = por %p145, %p146
    %p149 = scmp.ne.s32.totalorder %s134, %s148
    %p150 = scmp.eq.s32.totalorder %s19, 0
    %p151 = por %p149, %p150
    %s153 = sadd.s32 %s152, 1
    %p156 = scmp.eq.s32.totalorder %s13, 1
    %p157 = scmp.ne.s32.totalorder %s152, %s154
    %p158 = scmp.eq.s32.totalorder %s13, 0
    %p159 = por %p157, %p158
    %p160 = scmp.ne.s32.totalorder %s152, %s154
    %p161 = scmp.eq.s32.totalorder %s18, 1
    %p162 = por %p160, %p161
    %p163 = scmp.ne.s32.totalorder %s154, %s155
    %p164 = scmp.eq.s32.totalorder %s18, 0
    %p165 = por %p163, %p164
    %p166 = scmp.ne.s32.totalorder %s154, %s155
    %p167 = scmp.eq.s32.totalorder %s19, 1
    %p168 = por %p166, %p167
    %p170 = scmp.ne.s32.totalorder %s155, %s169
    %p171 = scmp.eq.s32.totalorder %s19, 0
    %p172 = por %p170, %p171
    %s173 = ssub.s32 %s13, %s20
    %p174 = scmp.eq.s32.totalorder %s173, 0
    %s176 = sadd.s32 %s175, 1
    %s177 = scalar_select %p174, %s175, %s176
    %p180 = pneg %p174
    %p181 = scmp.eq.s32.totalorder %s13, 1
    %p182 = por %p180, %p181
    %p183 = scmp.ne.s32.totalorder %s175, %s178
    %p184 = scmp.eq.s32.totalorder %s13, 0
    %p185 = por %p183, %p184
    %p186 = scmp.ne.s32.totalorder %s175, %s178
    %p187 = scmp.eq.s32.totalorder %s18, 1
    %p188 = por %p186, %p187
    %p189 = scmp.ne.s32.totalorder %s178, %s179
    %p190 = scmp.eq.s32.totalorder %s18, 0
    %p191 = por %p189, %p190
    %p192 = scmp.ne.s32.totalorder %s178, %s179
    %p193 = scmp.eq.s32.totalorder %s19, 1
    %p194 = por %p192, %p193
    %p196 = scmp.ne.s32.totalorder %s179, %s195
    %p197 = scmp.eq.s32.totalorder %s19, 0
    %p198 = por %p196, %p197
    %p199 = scmp.le.s32.totalorder 1, %s13
    %p200 = scmp.lt.s32.totalorder %s13, 3
    %p201 = pnand %p199, %p200
    %p202 = pneg %p201
    // Predicated region
    $region9: #{generator_forward.1} parent=5 // pred_check
      _
    $region10: #{generator_forward.1} parent=5 // pred_check_branch
      %204 = sbr.rel (%p201) target = $region12
    $region11: #{generator_forward.1} parent=5 // pred_region
      %s205 = ssub.s32 %s13, 1
      // Predicated region
      $region13: #{generator_forward.1} parent=11 // pred_check
        %p206 = pneg %p60
      $region14: #{generator_forward.1} parent=11 // pred_check_branch
        %208 = sbr.rel (%p206) target = $region16
      $region15: #{generator_forward.1} parent=11 // pred_region
        _
      $region16: #{generator_forward.1} parent=11 // pred_fallthru
        _
      // Predicated region
      $region17: #{generator_forward.1} parent=11 // pred_check
        %p209 = pneg %p81
      $region18: #{generator_forward.1} parent=11 // pred_check_branch
        %211 = sbr.rel (%p209) target = $region20
      $region19: #{generator_forward.1} parent=11 // pred_region
        _
      $region20: #{generator_forward.1} parent=11 // pred_fallthru
        _
      // Predicated region
      $region21: #{generator_forward.1} parent=11 // pred_check
        %p212 = pneg %p102
      $region22: #{generator_forward.1} parent=11 // pred_check_branch
        %214 = sbr.rel (%p212) target = $region24
      $region23: #{generator_forward.1} parent=11 // pred_region
        _
      $region24: #{generator_forward.1} parent=11 // pred_fallthru
        _
      // Predicated region
      $region25: #{generator_forward.1} parent=11 // pred_check
        %p215 = pneg %p123
      $region26: #{generator_forward.1} parent=11 // pred_check_branch
        %217 = sbr.rel (%p215) target = $region28
      $region27: #{generator_forward.1} parent=11 // pred_region
        _
      $region28: #{generator_forward.1} parent=11 // pred_fallthru
        _
      // Predicated region
      $region29: #{generator_forward.1} parent=11 // pred_check
        %p218 = pneg %p144
      $region30: #{generator_forward.1} parent=11 // pred_check_branch
        %220 = sbr.rel (%p218) target = $region32
      $region31: #{generator_forward.1} parent=11 // pred_region
        _
      $region32: #{generator_forward.1} parent=11 // pred_fallthru
        _
      // Predicated region
      $region33: #{generator_forward.1} parent=11 // pred_check
        %p221 = pneg %p165
      $region34: #{generator_forward.1} parent=11 // pred_check_branch
        %223 = sbr.rel (%p221) target = $region36
      $region35: #{generator_forward.1} parent=11 // pred_region
        _
      $region36: #{generator_forward.1} parent=11 // pred_fallthru
        _
    $region12: #{generator_forward.1} parent=5 // pred_fallthru
      _
    %p224 = scmp.lt.s32.totalorder %s13, 2
    // Predicated region
    $region37: #{generator_forward.1} parent=5 // pred_check
      %p225 = pneg %p224
    $region38: #{generator_forward.1} parent=5 // pred_check_branch
      %227 = sbr.rel (%p225) target = $region40
    $region39: #{generator_forward.1} parent=5 // pred_region
      // Predicated region
      $region41: #{generator_forward.1} parent=39 // pred_check
        %p228 = pneg %p33
      $region42: #{generator_forward.1} parent=39 // pred_check_branch
        %230 = sbr.rel (%p228) target = $region44
      $region43: #{generator_forward.1} parent=39 // pred_region
        %s231 = smul.u32 16, %s13
        %p232 = scmp.lt.s32.totalorder %s231, 31
        %s233 = scalar_select %p232, %s231, 31
        %s234 = smul.addr %s233, 4
        %s235 = scalar_lea.vmem %s0, %s234
        %s236 = smul.u32 16, %s13
      $region44: #{generator_forward.1} parent=39 // pred_fallthru
        _
    $region40: #{generator_forward.1} parent=5 // pred_fallthru
      _
    %p237 = scmp.le.s32.totalorder 1, %s13
    %p238 = scmp.lt.s32.totalorder %s13, 3
    %p239 = pnand %p237, %p238
    %p240 = pneg %p239
    // Predicated region
    $region45: #{generator_forward.1} parent=5 // pred_check
      _
    $region46: #{generator_forward.1} parent=5 // pred_check_branch
      %242 = sbr.rel (%p239) target = $region48
    $region47: #{generator_forward.1} parent=5 // pred_region
      %s243 = ssub.s32 %s13, 1
      %s244 = smul.u32 16, %s18
      %p245 = scmp.lt.s32.totalorder %s244, 31
      %s246 = scalar_select %p245, %s244, 31
      %s247 = smul.addr %s246, 4
      %s248 = scalar_lea.vmem %s0, %s247
      %p249 = pneg %p39
      %p250 = pneg %p36
      %p251 = pneg %p60
      %p252 = pneg %p57
      %p253 = pneg %p81
      %p254 = pneg %p78
      %p255 = pneg %p102
      %p256 = pneg %p99
      %p257 = pneg %p123
      %p258 = pneg %p120
      %p259 = pneg %p144
      %p260 = pneg %p141
      %p261 = pneg %p165
      %p262 = pneg %p162
      %p263 = pneg %p191
      %p264 = pneg %p188
      %s265 = smul.u32 16, %s18
      %p266 = scmp.lt.s32.totalorder %s265, 31
      %s267 = scalar_select %p266, %s265, 31
      %s268 = smul.addr %s267, 8
      %s269 = scalar_lea.vmem %s7, %s268
      %s270 = smul.u32 16, %s18
      %p271 = scmp.lt.s32.totalorder %s270, 31
      %s272 = scalar_select %p271, %s270, 31
      %s273 = smul.addr %s272, 4
      %s274 = scalar_lea.vmem %s0, %s273
      %s275 = smul.u32 16, %s18
      %s276 = smul.u32 16, %s18
      %p277 = scmp.lt.s32.totalorder %s276, 31
      %s278 = scalar_select %p277, %s276, 31
      %s279 = smul.addr %s278, 8
      %s280 = scalar_lea.vmem %s7, %s279
      %s281 = smul.u32 16, %s18
      %v283 = vld [vmem:[%s274] sm:$0xf]
      %v284 = vld [vmem:[%s274 + $0x4] sm:$0xf]
      %v285 = vld [vmem:[%s274 + $0x8] sm:$0xf]
      %v286 = vld [vmem:[%s274 + $0xc] sm:$0xf]
      %v287 = vld [vmem:[%s274 + $0x10] sm:$0xf]
      %v288 = vld [vmem:[%s274 + $0x14] sm:$0xf]
      %v289 = vld [vmem:[%s274 + $0x18] sm:$0xf]
      %v290 = vld [vmem:[%s274 + $0x1c] sm:$0xf]
      %v291 = vld [vmem:[%s274 + $0x20] sm:$0xf]
      %v292 = vld [vmem:[%s274 + $0x24] sm:$0xf]
      %v293 = vld [vmem:[%s274 + $0x28] sm:$0xf]
      %v294 = vld [vmem:[%s274 + $0x2c] sm:$0xf]
      %v295 = vld [vmem:[%s274 + $0x30] sm:$0xf]
      %v296 = vld [vmem:[%s274 + $0x34] sm:$0xf]
      %v297 = vld [vmem:[%s274 + $0x38] sm:$0xf]
      %v298 = vld [vmem:[%s274 + $0x3c] sm:$0xf]
      %v299 = vld [vmem:[%s1] sm:$0xf]
      %v300 = vld [vmem:[%s1 + $0x4] sm:$0xf]
      %v301 = vld [vmem:[%s1 + $0x8] sm:$0xf]
      %v302 = vld [vmem:[%s1 + $0xc] sm:$0xf]
      %v303 = vld [vmem:[%s1 + $0x10] sm:$0xf]
      %v304 = vld [vmem:[%s1 + $0x14] sm:$0xf]
      %v305 = vld [vmem:[%s1 + $0x18] sm:$0xf]
      %v306 = vld [vmem:[%s1 + $0x1c] sm:$0xf]
      %v307 = vld [vmem:[%s1 + $0x20] sm:$0xf]
      %v308 = vld [vmem:[%s1 + $0x24] sm:$0xf]
      %v309 = vld [vmem:[%s1 + $0x28] sm:$0xf]
      %v310 = vld [vmem:[%s1 + $0x2c] sm:$0xf]
      %v311 = vld [vmem:[%s1 + $0x30] sm:$0xf]
      %v312 = vld [vmem:[%s1 + $0x34] sm:$0xf]
      %v313 = vld [vmem:[%s1 + $0x38] sm:$0xf]
      %v314 = vld [vmem:[%s1 + $0x3c] sm:$0xf]
      %v315 = vld [vmem:[%s2] sm:$0x1]
      %v317 = vlaneseq
      %v318 = vshrl.u32 %v317, 7
      %v319 = vsub.s32 0, %v318
      %v320 = vrot.slane %v315, %v319
      %v338 = vunpack.c.l.b16 %v283
      %v339 = vunpack.c.l.b16 %v284
      %v340 = vunpack.c.l.b16 %v285
      %v341 = vunpack.c.l.b16 %v286
      %v342 = vunpack.c.l.b16 %v287
      %v343 = vunpack.c.l.b16 %v288
      %v344 = vunpack.c.l.b16 %v289
      %v345 = vunpack.c.l.b16 %v290
      %v346 = vunpack.c.l.b16 %v291
      %v347 = vunpack.c.l.b16 %v292
      %v348 = vunpack.c.l.b16 %v293
      %v349 = vunpack.c.l.b16 %v294
      %v350 = vunpack.c.l.b16 %v295
      %v351 = vunpack.c.l.b16 %v296
      %v352 = vunpack.c.l.b16 %v297
      %v353 = vunpack.c.l.b16 %v298
      %v354 = vpack.c.b16 %v339, %v338
      %v355 = vpack.c.b16 %v341, %v340
      %v356 = vpack.c.b16 %v343, %v342
      %v357 = vpack.c.b16 %v345, %v344
      %v358 = vpack.c.b16 %v347, %v346
      %v359 = vpack.c.b16 %v349, %v348
      %v360 = vpack.c.b16 %v351, %v350
      %v361 = vpack.c.b16 %v353, %v352
      %v386 = vunpack.c.l.b16 %v299
      %v387 = vunpack.c.l.b16 %v300
      %v388 = vunpack.c.l.b16 %v301
      %v389 = vunpack.c.l.b16 %v302
      %v390 = vunpack.c.l.b16 %v303
      %v391 = vunpack.c.l.b16 %v304
      %v392 = vunpack.c.l.b16 %v305
      %v393 = vunpack.c.l.b16 %v306
      %v394 = vunpack.c.l.b16 %v307
      %v395 = vunpack.c.l.b16 %v308
      %v396 = vunpack.c.l.b16 %v309
      %v397 = vunpack.c.l.b16 %v310
      %v398 = vunpack.c.l.b16 %v311
      %v399 = vunpack.c.l.b16 %v312
      %v400 = vunpack.c.l.b16 %v313
      %v401 = vunpack.c.l.b16 %v314
      %v402 = vpack.c.b16 %v387, %v386
      %v403 = vpack.c.b16 %v389, %v388
      %v404 = vpack.c.b16 %v391, %v390
      %v405 = vpack.c.b16 %v393, %v392
      %v406 = vpack.c.b16 %v395, %v394
      %v407 = vpack.c.b16 %v397, %v396
      %v408 = vpack.c.b16 %v399, %v398
      %v409 = vpack.c.b16 %v401, %v400
      %418 = vmatprep.subr.bf16.mxu0 0
      %419 = vmatpush1.bf16.msra.mxu0 %v402
      %420 = vmatprep.subr.bf16.mxu0 0
      %421 = vmatpush1.bf16.msra.mxu0 %v403
      %422 = vmatprep.subr.bf16.mxu0 0
      %423 = vmatpush1.bf16.msra.mxu0 %v404
      %424 = vmatprep.subr.bf16.mxu0 0
      %425 = vmatpush1.bf16.msra.mxu0 %v405
      %426 = vmatprep.subr.bf16.mxu0 0
      %427 = vmatpush1.bf16.msra.mxu0 %v406
      %428 = vmatprep.subr.bf16.mxu0 0
      %429 = vmatpush1.bf16.msra.mxu0 %v407
      %430 = vmatprep.subr.bf16.mxu0 0
      %431 = vmatpush1.bf16.msra.mxu0 %v408
      %432 = vmatprep.subr.bf16.mxu0 0
      %433 = vmatpush1.bf16.msra.mxu0 %v409
      %434 = vmatprep.subr.bf16.mxu0 0
      %435 = vmatpush1.bf16.msra.mxu0 0
      %436 = vmatprep.subr.bf16.mxu0 0
      %437 = vmatpush1.bf16.msra.mxu0 0
      %438 = vmatprep.subr.bf16.mxu0 0
      %439 = vmatpush1.bf16.msra.mxu0 0
      %440 = vmatprep.subr.bf16.mxu0 0
      %441 = vmatpush1.bf16.msra.mxu0 0
      %442 = vmatprep.subr.bf16.mxu0 0
      %443 = vmatpush1.bf16.msra.mxu0 0
      %444 = vmatprep.subr.bf16.mxu0 0
      %445 = vmatpush1.bf16.msra.mxu0 0
      %446 = vmatprep.subr.bf16.mxu0 0
      %447 = vmatpush1.bf16.msra.mxu0 0
      %448 = vmatprep.subr.bf16.mxu0 0
      %449 = vmatpush1.bf16.msra.mxu0 0
      %450 = vmatprep.mubr.bf16.mxu0 0
      %451 = vmatmul.mubr.bf16.gmra.mrb[0].mxu0 %v354
      %v452 = vpop.f32.mrb[0].mxu0
      %v453 = vadd.f32 %v320, %v452
      %v454 = vpop.f32.mrb[0].mxu0
      %v455 = vpop.f32.mrb[0].mxu0
      %v456 = vadd.f32 %v320, %v455
      %v457 = vpop.f32.mrb[0].mxu0
      %458 = vmatprep.mubr.bf16.mxu0 0
      %459 = vmatmul.mubr.bf16.gmra.mrb[0].mxu0 %v355
      %v460 = vpop.f32.mrb[0].mxu0
      %v461 = vadd.f32 %v320, %v460
      %v462 = vpop.f32.mrb[0].mxu0
      %v463 = vpop.f32.mrb[0].mxu0
      %v464 = vadd.f32 %v320, %v463
      %v465 = vpop.f32.mrb[0].mxu0
      %466 = vmatprep.mubr.bf16.mxu0 0
      %467 = vmatmul.mubr.bf16.gmra.mrb[0].mxu0 %v356
      %v468 = vpop.f32.mrb[0].mxu0
      %v469 = vadd.f32 %v320, %v468
      %v470 = vpop.f32.mrb[0].mxu0
      %v471 = vpop.f32.mrb[0].mxu0
      %v472 = vadd.f32 %v320, %v471
      %v473 = vpop.f32.mrb[0].mxu0
      %474 = vmatprep.mubr.bf16.mxu0 0
      %475 = vmatmul.mubr.bf16.gmra.mrb[0].mxu0 %v357
      %v476 = vpop.f32.mrb[0].mxu0
      %v477 = vadd.f32 %v320, %v476
      %v478 = vpop.f32.mrb[0].mxu0
      %v479 = vpop.f32.mrb[0].mxu0
      %v480 = vadd.f32 %v320, %v479
      %v481 = vpop.f32.mrb[0].mxu0
      %482 = vmatprep.mubr.bf16.mxu0 0
      %483 = vmatmul.mubr.bf16.gmra.mrb[0].mxu0 %v358
      %v484 = vpop.f32.mrb[0].mxu0
      %v485 = vadd.f32 %v320, %v484
      %v486 = vpop.f32.mrb[0].mxu0
      %v487 = vpop.f32.mrb[0].mxu0
      %v488 = vadd.f32 %v320, %v487
      %v489 = vpop.f32.mrb[0].mxu0
      %490 = vmatprep.mubr.bf16.mxu0 0
      %491 = vmatmul.mubr.bf16.gmra.mrb[0].mxu0 %v359
      %v492 = vpop.f32.mrb[0].mxu0
      %v493 = vadd.f32 %v320, %v492
      %v494 = vpop.f32.mrb[0].mxu0
      %v495 = vpop.f32.mrb[0].mxu0
      %v496 = vadd.f32 %v320, %v495
      %v497 = vpop.f32.mrb[0].mxu0
      %498 = vmatprep.mubr.bf16.mxu0 0
      %499 = vmatmul.mubr.bf16.gmra.mrb[0].mxu0 %v360
      %v500 = vpop.f32.mrb[0].mxu0
      %v501 = vadd.f32 %v320, %v500
      %v502 = vpop.f32.mrb[0].mxu0
      %v503 = vpop.f32.mrb[0].mxu0
      %v504 = vadd.f32 %v320, %v503
      %v505 = vpop.f32.mrb[0].mxu0
      %506 = vmatprep.mubr.bf16.mxu0 0
      %507 = vmatmul.mubr.bf16.gmra.mrb[0].mxu0 %v361
      %v508 = vpop.f32.mrb[0].mxu0
      %v509 = vadd.f32 %v320, %v508
      %v510 = vpop.f32.mrb[0].mxu0
      %v511 = vpop.f32.mrb[0].mxu0
      %v512 = vadd.f32 %v320, %v511
      %v513 = vpop.f32.mrb[0].mxu0
      %514 = vdwg.mxu0
      %v515 = vmax.f32 %v453, 0.0
      %v516 = vmax.f32 %v456, 0.0
      %v517 = vmax.f32 %v461, 0.0
      %v518 = vmax.f32 %v464, 0.0
      %v519 = vmax.f32 %v469, 0.0
      %v520 = vmax.f32 %v472, 0.0
      %v521 = vmax.f32 %v477, 0.0
      %v522 = vmax.f32 %v480, 0.0
      %v523 = vmax.f32 %v485, 0.0
      %v524 = vmax.f32 %v488, 0.0
      %v525 = vmax.f32 %v493, 0.0
      %v526 = vmax.f32 %v496, 0.0
      %v527 = vmax.f32 %v501, 0.0
      %v528 = vmax.f32 %v504, 0.0
      %v529 = vmax.f32 %v509, 0.0
      %v530 = vmax.f32 %v512, 0.0
      %v531 = vpack.c.bf16 %v516, %v515
      %v532 = vpack.c.bf16 %v518, %v517
      %v533 = vpack.c.bf16 %v520, %v519
      %v534 = vpack.c.bf16 %v522, %v521
      %v535 = vpack.c.bf16 %v524, %v523
      %v536 = vpack.c.bf16 %v526, %v525
      %v537 = vpack.c.bf16 %v528, %v527
      %v538 = vpack.c.bf16 %v530, %v529
      %v539 = vld [vmem:[%s3] sm:$0xff]
      %v540 = vld [vmem:[%s3 + $0x8] sm:$0xff]
      %v541 = vld [vmem:[%s3 + $0x10] sm:$0xff]
      %v542 = vld [vmem:[%s3 + $0x18] sm:$0xff]
      %v543 = vld [vmem:[%s3 + $0x20] sm:$0xff]
      %v544 = vld [vmem:[%s3 + $0x28] sm:$0xff]
      %v545 = vld [vmem:[%s3 + $0x30] sm:$0xff]
      %v546 = vld [vmem:[%s3 + $0x38] sm:$0xff]
      %v547 = vld [vmem:[%s3 + $0x40] sm:$0xff]
      %v548 = vld [vmem:[%s3 + $0x48] sm:$0xff]
      %v549 = vld [vmem:[%s3 + $0x50] sm:$0xff]
      %v550 = vld [vmem:[%s3 + $0x58] sm:$0xff]
      %v551 = vld [vmem:[%s3 + $0x60] sm:$0xff]
      %v552 = vld [vmem:[%s3 + $0x68] sm:$0xff]
      %v553 = vld [vmem:[%s3 + $0x70] sm:$0xff]
      %v554 = vld [vmem:[%s3 + $0x78] sm:$0xff]
      %v555 = vld [vmem:[%s4] sm:$0x3]
      %v557 = vlaneseq
      %v558 = vshrl.u32 %v557, 7
      %v559 = vsub.s32 0, %v558
      %v560 = vrot.slane %v555, %v559
      %v561 = vlaneseq
      %v562 = vshrl.u32 %v561, 7
      %v563 = vsub.s32 1, %v562
      %v564 = vrot.slane %v555, %v563
      %v583 = vunpack.c.l.b16 %v539
      %v584 = vunpack.c.h.b16 %v539
      %v585 = vunpack.c.l.b16 %v540
      %v586 = vunpack.c.h.b16 %v540
      %v587 = vunpack.c.l.b16 %v541
      %v588 = vunpack.c.h.b16 %v541
      %v589 = vunpack.c.l.b16 %v542
      %v590 = vunpack.c.h.b16 %v542
      %v591 = vunpack.c.l.b16 %v543
      %v592 = vunpack.c.h.b16 %v543
      %v593 = vunpack.c.l.b16 %v544
      %v594 = vunpack.c.h.b16 %v544
      %v595 = vunpack.c.l.b16 %v545
      %v596 = vunpack.c.h.b16 %v545
      %v597 = vunpack.c.l.b16 %v546
      %v598 = vunpack.c.h.b16 %v546
      %v599 = vunpack.c.l.b16 %v547
      %v600 = vunpack.c.h.b16 %v547
      %v601 = vunpack.c.l.b16 %v548
      %v602 = vunpack.c.h.b16 %v548
      %v603 = vunpack.c.l.b16 %v549
      %v604 = vunpack.c.h.b16 %v549
      %v605 = vunpack.c.l.b16 %v550
      %v606 = vunpack.c.h.b16 %v550
      %v607 = vunpack.c.l.b16 %v551
      %v608 = vunpack.c.h.b16 %v551
      %v609 = vunpack.c.l.b16 %v552
      %v610 = vunpack.c.h.b16 %v552
      %v611 = vunpack.c.l.b16 %v553
      %v612 = vunpack.c.h.b16 %v553
      %v613 = vunpack.c.l.b16 %v554
      %v614 = vunpack.c.h.b16 %v554
      %v615 = vpack.c.b16 %v585, %v583
      %v616 = vpack.c.b16 %v586, %v584
      %v617 = vpack.c.b16 %v589, %v587
      %v618 = vpack.c.b16 %v590, %v588
      %v619 = vpack.c.b16 %v593, %v591
      %v620 = vpack.c.b16 %v594, %v592
      %v621 = vpack.c.b16 %v597, %v595
      %v622 = vpack.c.b16 %v598, %v596
      %v623 = vpack.c.b16 %v601, %v599
      %v624 = vpack.c.b16 %v602, %v600
      %v625 = vpack.c.b16 %v605, %v603
      %v626 = vpack.c.b16 %v606, %v604
      %v627 = vpack.c.b16 %v609, %v607
      %v628 = vpack.c.b16 %v610, %v608
      %v629 = vpack.c.b16 %v613, %v611
      %v630 = vpack.c.b16 %v614, %v612
      %647 = vmatprep.subr.bf16.mxu0 %v616
      %648 = vmatpush1.bf16.msra.mxu0 %v615
      %649 = vmatprep.subr.bf16.mxu0 %v618
      %650 = vmatpush1.bf16.msra.mxu0 %v617
      %651 = vmatprep.subr.bf16.mxu0 %v620
      %652 = vmatpush1.bf16.msra.mxu0 %v619
      %653 = vmatprep.subr.bf16.mxu0 %v622
      %654 = vmatpush1.bf16.msra.mxu0 %v621
      %655 = vmatprep.subr.bf16.mxu0 %v624
      %656 = vmatpush1.bf16.msra.mxu0 %v623
      %657 = vmatprep.subr.bf16.mxu0 %v626
      %658 = vmatpush1.bf16.msra.mxu0 %v625
      %659 = vmatprep.subr.bf16.mxu0 %v628
      %660 = vmatpush1.bf16.msra.mxu0 %v627
      %661 = vmatprep.subr.bf16.mxu0 %v630
      %662 = vmatpush1.bf16.msra.mxu0 %v629
      %663 = vmatprep.subr.bf16.mxu0 0
      %664 = vmatpush1.bf16.msra.mxu0 0
      %665 = vmatprep.subr.bf16.mxu0 0
      %666 = vmatpush1.bf16.msra.mxu0 0
      %667 = vmatprep.subr.bf16.mxu0 0
      %668 = vmatpush1.bf16.msra.mxu0 0
      %669 = vmatprep.subr.bf16.mxu0 0
      %670 = vmatpush1.bf16.msra.mxu0 0
      %671 = vmatprep.subr.bf16.mxu0 0
      %672 = vmatpush1.bf16.msra.mxu0 0
      %673 = vmatprep.subr.bf16.mxu0 0
      %674 = vmatpush1.bf16.msra.mxu0 0
      %675 = vmatprep.subr.bf16.mxu0 0
      %676 = vmatpush1.bf16.msra.mxu0 0
      %677 = vmatprep.subr.bf16.mxu0 0
      %678 = vmatpush1.bf16.msra.mxu0 0
      %679 = vmatprep.mubr.bf16.mxu0 0
      %680 = vmatmul.mubr.bf16.gmra.mrb[0].mxu0 %v531
      %v681 = vpop.f32.mrb[0].mxu0
      %v682 = vadd.f32 %v560, %v681
      %v683 = vpop.f32.mrb[0].mxu0
      %v684 = vadd.f32 %v564, %v683
      %v685 = vpop.f32.mrb[0].mxu0
      %v686 = vadd.f32 %v560, %v685
      %v687 = vpop.f32.mrb[0].mxu0
      %v688 = vadd.f32 %v564, %v687
      %689 = vmatprep.mubr.bf16.mxu0 0
      %690 = vmatmul.mubr.bf16.gmra.mrb[0].mxu0 %v532
      %v691 = vpop.f32.mrb[0].mxu0
      %v692 = vadd.f32 %v560, %v691
      %v693 = vpop.f32.mrb[0].mxu0
      %v694 = vadd.f32 %v564, %v693
      %v695 = vpop.f32.mrb[0].mxu0
      %v696 = vadd.f32 %v560, %v695
      %v697 = vpop.f32.mrb[0].mxu0
      %v698 = vadd.f32 %v564, %v697
      %699 = vmatprep.mubr.bf16.mxu0 0
      %700 = vmatmul.mubr.bf16.gmra.mrb[0].mxu0 %v533
      %v701 = vpop.f32.mrb[0].mxu0
      %v702 = vadd.f32 %v560, %v701
      %v703 = vpop.f32.mrb[0].mxu0
      %v704 = vadd.f32 %v564, %v703
      %v705 = vpop.f32.mrb[0].mxu0
      %v706 = vadd.f32 %v560, %v705
      %v707 = vpop.f32.mrb[0].mxu0
      %v708 = vadd.f32 %v564, %v707
      %709 = vmatprep.mubr.bf16.mxu0 0
      %710 = vmatmul.mubr.bf16.gmra.mrb[0].mxu0 %v534
      %v711 = vpop.f32.mrb[0].mxu0
      %v712 = vadd.f32 %v560, %v711
      %v713 = vpop.f32.mrb[0].mxu0
      %v714 = vadd.f32 %v564, %v713
      %v715 = vpop.f32.mrb[0].mxu0
      %v716 = vadd.f32 %v560, %v715
      %v717 = vpop.f32.mrb[0].mxu0
      %v718 = vadd.f32 %v564, %v717
      %719 = vmatprep.mubr.bf16.mxu0 0
      %720 = vmatmul.mubr.bf16.gmra.mrb[0].mxu0 %v535
      %v721 = vpop.f32.mrb[0].mxu0
      %v722 = vadd.f32 %v560, %v721
      %v723 = vpop.f32.mrb[0].mxu0
      %v724 = vadd.f32 %v564, %v723
      %v725 = vpop.f32.mrb[0].mxu0
      %v726 = vadd.f32 %v560, %v725
      %v727 = vpop.f32.mrb[0].mxu0
      %v728 = vadd.f32 %v564, %v727
      %729 = vmatprep.mubr.bf16.mxu0 0
      %730 = vmatmul.mubr.bf16.gmra.mrb[0].mxu0 %v536
      %v731 = vpop.f32.mrb[0].mxu0
      %v732 = vadd.f32 %v560, %v731
      %v733 = vpop.f32.mrb[0].mxu0
      %v734 = vadd.f32 %v564, %v733
      %v735 = vpop.f32.mrb[0].mxu0
      %v736 = vadd.f32 %v560, %v735
      %v737 = vpop.f32.mrb[0].mxu0
      %v738 = vadd.f32 %v564, %v737
      %739 = vmatprep.mubr.bf16.mxu0 0
      %740 = vmatmul.mubr.bf16.gmra.mrb[0].mxu0 %v537
      %v741 = vpop.f32.mrb[0].mxu0
      %v742 = vadd.f32 %v560, %v741
      %v743 = vpop.f32.mrb[0].mxu0
      %v744 = vadd.f32 %v564, %v743
      %v745 = vpop.f32.mrb[0].mxu0
      %v746 = vadd.f32 %v560, %v745
      %v747 = vpop.f32.mrb[0].mxu0
      %v748 = vadd.f32 %v564, %v747
      %749 = vmatprep.mubr.bf16.mxu0 0
      %750 = vmatmul.mubr.bf16.gmra.mrb[0].mxu0 %v538
      %v751 = vpop.f32.mrb[0].mxu0
      %v752 = vadd.f32 %v560, %v751
      %v753 = vpop.f32.mrb[0].mxu0
      %v754 = vadd.f32 %v564, %v753
      %v755 = vpop.f32.mrb[0].mxu0
      %v756 = vadd.f32 %v560, %v755
      %v757 = vpop.f32.mrb[0].mxu0
      %v758 = vadd.f32 %v564, %v757
      %759 = vdwg.mxu0
      %v760 = vmax.f32 %v682, 0.0
      %v761 = vmax.f32 %v684, 0.0
      %v762 = vmax.f32 %v686, 0.0
      %v763 = vmax.f32 %v688, 0.0
      %v764 = vmax.f32 %v692, 0.0
      %v765 = vmax.f32 %v694, 0.0
      %v766 = vmax.f32 %v696, 0.0
      %v767 = vmax.f32 %v698, 0.0
      %v768 = vmax.f32 %v702, 0.0
      %v769 = vmax.f32 %v704, 0.0
      %v770 = vmax.f32 %v706, 0.0
      %v771 = vmax.f32 %v708, 0.0
      %v772 = vmax.f32 %v712, 0.0
      %v773 = vmax.f32 %v714, 0.0
      %v774 = vmax.f32 %v716, 0.0
      %v775 = vmax.f32 %v718, 0.0
      %v776 = vmax.f32 %v722, 0.0
      %v777 = vmax.f32 %v724, 0.0
      %v778 = vmax.f32 %v726, 0.0
      %v779 = vmax.f32 %v728, 0.0
      %v780 = vmax.f32 %v732, 0.0
      %v781 = vmax.f32 %v734, 0.0
      %v782 = vmax.f32 %v736, 0.0
      %v783 = vmax.f32 %v738, 0.0
      %v784 = vmax.f32 %v742, 0.0
      %v785 = vmax.f32 %v744, 0.0
      %v786 = vmax.f32 %v746, 0.0
      %v787 = vmax.f32 %v748, 0.0
      %v788 = vmax.f32 %v752, 0.0
      %v789 = vmax.f32 %v754, 0.0
      %v790 = vmax.f32 %v756, 0.0
      %v791 = vmax.f32 %v758, 0.0
      %v792 = vpack.c.bf16 %v762, %v760
      %v793 = vpack.c.bf16 %v763, %v761
      %v794 = vpack.c.bf16 %v766, %v764
      %v795 = vpack.c.bf16 %v767, %v765
      %v796 = vpack.c.bf16 %v770, %v768
      %v797 = vpack.c.bf16 %v771, %v769
      %v798 = vpack.c.bf16 %v774, %v772
      %v799 = vpack.c.bf16 %v775, %v773
      %v800 = vpack.c.bf16 %v778, %v776
      %v801 = vpack.c.bf16 %v779, %v777
      %v802 = vpack.c.bf16 %v782, %v780
      %v803 = vpack.c.bf16 %v783, %v781
      %v804 = vpack.c.bf16 %v786, %v784
      %v805 = vpack.c.bf16 %v787, %v785
      %v806 = vpack.c.bf16 %v790, %v788
      %v807 = vpack.c.bf16 %v791, %v789
      %v808 = vld [vmem:[%s5] sm:$0xf]
      %v809 = vld [vmem:[%s5 + $0x4] sm:$0xf]
      %v810 = vld [vmem:[%s5 + $0x8] sm:$0xf]
      %v811 = vld [vmem:[%s5 + $0xc] sm:$0xf]
      %v812 = vld [vmem:[%s5 + $0x10] sm:$0xf]
      %v813 = vld [vmem:[%s5 + $0x14] sm:$0xf]
      %v814 = vld [vmem:[%s5 + $0x18] sm:$0xf]
      %v815 = vld [vmem:[%s5 + $0x1c] sm:$0xf]
      %v816 = vld [vmem:[%s5 + $0x20] sm:$0xf]
      %v817 = vld [vmem:[%s5 + $0x24] sm:$0xf]
      %v818 = vld [vmem:[%s5 + $0x28] sm:$0xf]
      %v819 = vld [vmem:[%s5 + $0x2c] sm:$0xf]
      %v820 = vld [vmem:[%s5 + $0x30] sm:$0xf]
      %v821 = vld [vmem:[%s5 + $0x34] sm:$0xf]
      %v822 = vld [vmem:[%s5 + $0x38] sm:$0xf]
      %v823 = vld [vmem:[%s5 + $0x3c] sm:$0xf]
      %v824 = vld [vmem:[%s5 + $0x40] sm:$0xf]
      %v825 = vld [vmem:[%s5 + $0x44] sm:$0xf]
      %v826 = vld [vmem:[%s5 + $0x48] sm:$0xf]
      %v827 = vld [vmem:[%s5 + $0x4c] sm:$0xf]
      %v828 = vld [vmem:[%s5 + $0x50] sm:$0xf]
      %v829 = vld [vmem:[%s5 + $0x54] sm:$0xf]
      %v830 = vld [vmem:[%s5 + $0x58] sm:$0xf]
      %v831 = vld [vmem:[%s5 + $0x5c] sm:$0xf]
      %v832 = vld [vmem:[%s5 + $0x60] sm:$0xf]
      %v833 = vld [vmem:[%s5 + $0x64] sm:$0xf]
      %v834 = vld [vmem:[%s5 + $0x68] sm:$0xf]
      %v835 = vld [vmem:[%s5 + $0x6c] sm:$0xf]
      %v836 = vld [vmem:[%s5 + $0x70] sm:$0xf]
      %v837 = vld [vmem:[%s5 + $0x74] sm:$0xf]
      %v838 = vld [vmem:[%s5 + $0x78] sm:$0xf]
      %v839 = vld [vmem:[%s5 + $0x7c] sm:$0xf]
      %v840 = vld [vmem:[%s6] sm:$0x1]
      %v842 = vlaneseq
      %v843 = vshrl.u32 %v842, 7
      %v844 = vsub.s32 0, %v843
      %v845 = vrot.slane %v840, %v844
      %v879 = vunpack.c.l.b16 %v808
      %v880 = vunpack.c.l.b16 %v809
      %v881 = vunpack.c.l.b16 %v810
      %v882 = vunpack.c.l.b16 %v811
      %v883 = vunpack.c.l.b16 %v812
      %v884 = vunpack.c.l.b16 %v813
      %v885 = vunpack.c.l.b16 %v814
      %v886 = vunpack.c.l.b16 %v815
      %v887 = vunpack.c.l.b16 %v816
      %v888 = vunpack.c.l.b16 %v817
      %v889 = vunpack.c.l.b16 %v818
      %v890 = vunpack.c.l.b16 %v819
      %v891 = vunpack.c.l.b16 %v820
      %v892 = vunpack.c.l.b16 %v821
      %v893 = vunpack.c.l.b16 %v822
      %v894 = vunpack.c.l.b16 %v823
      %v895 = vunpack.c.l.b16 %v824
      %v896 = vunpack.c.l.b16 %v825
      %v897 = vunpack.c.l.b16 %v826
      %v898 = vunpack.c.l.b16 %v827
      %v899 = vunpack.c.l.b16 %v828
      %v900 = vunpack.c.l.b16 %v829
      %v901 = vunpack.c.l.b16 %v830
      %v902 = vunpack.c.l.b16 %v831
      %v903 = vunpack.c.l.b16 %v832
      %v904 = vunpack.c.l.b16 %v833
      %v905 = vunpack.c.l.b16 %v834
      %v906 = vunpack.c.l.b16 %v835
      %v907 = vunpack.c.l.b16 %v836
      %v908 = vunpack.c.l.b16 %v837
      %v909 = vunpack.c.l.b16 %v838
      %v910 = vunpack.c.l.b16 %v839
      %v911 = vpack.c.b16 %v880, %v879
      %v912 = vpack.c.b16 %v882, %v881
      %v913 = vpack.c.b16 %v884, %v883
      %v914 = vpack.c.b16 %v886, %v885
      %v915 = vpack.c.b16 %v888, %v887
      %v916 = vpack.c.b16 %v890, %v889
      %v917 = vpack.c.b16 %v892, %v891
      %v918 = vpack.c.b16 %v894, %v893
      %v919 = vpack.c.b16 %v896, %v895
      %v920 = vpack.c.b16 %v898, %v897
      %v921 = vpack.c.b16 %v900, %v899
      %v922 = vpack.c.b16 %v902, %v901
      %v923 = vpack.c.b16 %v904, %v903
      %v924 = vpack.c.b16 %v906, %v905
      %v925 = vpack.c.b16 %v908, %v907
      %v926 = vpack.c.b16 %v910, %v909
      %943 = vmatprep.subr.bf16.mxu0 0
      %944 = vmatpush1.bf16.msra.mxu0 %v911
      %945 = vmatprep.subr.bf16.mxu0 0
      %946 = vmatpush1.bf16.msra.mxu0 %v912
      %947 = vmatprep.subr.bf16.mxu0 0
      %948 = vmatpush1.bf16.msra.mxu0 %v913
      %949 = vmatprep.subr.bf16.mxu0 0
      %950 = vmatpush1.bf16.msra.mxu0 %v914
      %951 = vmatprep.subr.bf16.mxu0 0
      %952 = vmatpush1.bf16.msra.mxu0 %v915
      %953 = vmatprep.subr.bf16.mxu0 0
      %954 = vmatpush1.bf16.msra.mxu0 %v916
      %955 = vmatprep.subr.bf16.mxu0 0
      %956 = vmatpush1.bf16.msra.mxu0 %v917
      %957 = vmatprep.subr.bf16.mxu0 0
      %958 = vmatpush1.bf16.msra.mxu0 %v918
      %959 = vmatprep.subr.bf16.mxu0 0
      %960 = vmatpush1.bf16.msra.mxu0 %v919
      %961 = vmatprep.subr.bf16.mxu0 0
      %962 = vmatpush1.bf16.msra.mxu0 %v920
      %963 = vmatprep.subr.bf16.mxu0 0
      %964 = vmatpush1.bf16.msra.mxu0 %v921
      %965 = vmatprep.subr.bf16.mxu0 0
      %966 = vmatpush1.bf16.msra.mxu0 %v922
      %967 = vmatprep.subr.bf16.mxu0 0
      %968 = vmatpush1.bf16.msra.mxu0 %v923
      %969 = vmatprep.subr.bf16.mxu0 0
      %970 = vmatpush1.bf16.msra.mxu0 %v924
      %971 = vmatprep.subr.bf16.mxu0 0
      %972 = vmatpush1.bf16.msra.mxu0 %v925
      %973 = vmatprep.subr.bf16.mxu0 0
      %974 = vmatpush1.bf16.msra.mxu0 %v926
      %975 = vmatprep.mubr.bf16.mxu0 %v793
      %976 = vmatmul.mubr.bf16.gmra.mrb[0].mxu0 %v792
      %v977 = vpop.f32.mrb[0].mxu0
      %v978 = vadd.f32 %v845, %v977
      %v979 = vpop.f32.mrb[0].mxu0
      %v980 = vpop.f32.mrb[0].mxu0
      %v981 = vadd.f32 %v845, %v980
      %v982 = vpop.f32.mrb[0].mxu0
      %983 = vmatprep.mubr.bf16.mxu0 %v795
      %984 = vmatmul.mubr.bf16.gmra.mrb[0].mxu0 %v794
      %v985 = vpop.f32.mrb[0].mxu0
      %v986 = vadd.f32 %v845, %v985
      %v987 = vpop.f32.mrb[0].mxu0
      %v988 = vpop.f32.mrb[0].mxu0
      %v989 = vadd.f32 %v845, %v988
      %v990 = vpop.f32.mrb[0].mxu0
      %991 = vmatprep.mubr.bf16.mxu0 %v797
      %992 = vmatmul.mubr.bf16.gmra.mrb[0].mxu0 %v796
      %v993 = vpop.f32.mrb[0].mxu0
      %v994 = vadd.f32 %v845, %v993
      %v995 = vpop.f32.mrb[0].mxu0
      %v996 = vpop.f32.mrb[0].mxu0
      %v997 = vadd.f32 %v845, %v996
      %v998 = vpop.f32.mrb[0].mxu0
      %999 = vmatprep.mubr.bf16.mxu0 %v799
      %1000 = vmatmul.mubr.bf16.gmra.mrb[0].mxu0 %v798
      %v1001 = vpop.f32.mrb[0].mxu0
      %v1002 = vadd.f32 %v845, %v1001
      %v1003 = vpop.f32.mrb[0].mxu0
      %v1004 = vpop.f32.mrb[0].mxu0
      %v1005 = vadd.f32 %v845, %v1004
      %v1006 = vpop.f32.mrb[0].mxu0
      %1007 = vmatprep.mubr.bf16.mxu0 %v801
      %1008 = vmatmul.mubr.bf16.gmra.mrb[0].mxu0 %v800
      %v1009 = vpop.f32.mrb[0].mxu0
      %v1010 = vadd.f32 %v845, %v1009
      %v1011 = vpop.f32.mrb[0].mxu0
      %v1012 = vpop.f32.mrb[0].mxu0
      %v1013 = vadd.f32 %v845, %v1012
      %v1014 = vpop.f32.mrb[0].mxu0
      %1015 = vmatprep.mubr.bf16.mxu0 %v803
      %1016 = vmatmul.mubr.bf16.gmra.mrb[0].mxu0 %v802
      %v1017 = vpop.f32.mrb[0].mxu0
      %v1018 = vadd.f32 %v845, %v1017
      %v1019 = vpop.f32.mrb[0].mxu0
      %v1020 = vpop.f32.mrb[0].mxu0
      %v1021 = vadd.f32 %v845, %v1020
      %v1022 = vpop.f32.mrb[0].mxu0
      %1023 = vmatprep.mubr.bf16.mxu0 %v805
      %1024 = vmatmul.mubr.bf16.gmra.mrb[0].mxu0 %v804
      %v1025 = vpop.f32.mrb[0].mxu0
      %v1026 = vadd.f32 %v845, %v1025
      %v1027 = vpop.f32.mrb[0].mxu0
      %v1028 = vpop.f32.mrb[0].mxu0
      %v1029 = vadd.f32 %v845, %v1028
      %v1030 = vpop.f32.mrb[0].mxu0
      %1031 = vmatprep.mubr.bf16.mxu0 %v807
      %1032 = vmatmul.mubr.bf16.gmra.mrb[0].mxu0 %v806
      %v1033 = vpop.f32.mrb[0].mxu0
      %v1034 = vadd.f32 %v845, %v1033
      %v1035 = vpop.f32.mrb[0].mxu0
      %v1036 = vpop.f32.mrb[0].mxu0
      %v1037 = vadd.f32 %v845, %v1036
      %v1038 = vpop.f32.mrb[0].mxu0
      %1039 = vdwg.mxu0
      %v1040 = vtanh.pop %v978
      %v1041 = vtanh.pop %v981
      %v1042 = vtanh.pop %v986
      %v1043 = vtanh.pop %v989
      %v1044 = vtanh.pop %v994
      %v1045 = vtanh.pop %v997
      %v1046 = vtanh.pop %v1002
      %v1047 = vtanh.pop %v1005
      %v1048 = vtanh.pop %v1010
      %v1049 = vtanh.pop %v1013
      %v1050 = vtanh.pop %v1018
      %v1051 = vtanh.pop %v1021
      %v1052 = vtanh.pop %v1026
      %v1053 = vtanh.pop %v1029
      %v1054 = vtanh.pop %v1034
      %v1055 = vtanh.pop %v1037
      %1056 = vst [vmem:[%s280] sm:$0xff] %v1040
      %1057 = vst [vmem:[%s280 + $0x8] sm:$0xff] %v1041
      %1058 = vst [vmem:[%s280 + $0x10] sm:$0xff] %v1042
      %1059 = vst [vmem:[%s280 + $0x18] sm:$0xff] %v1043
      %1060 = vst [vmem:[%s280 + $0x20] sm:$0xff] %v1044
      %1061 = vst [vmem:[%s280 + $0x28] sm:$0xff] %v1045
      %1062 = vst [vmem:[%s280 + $0x30] sm:$0xff] %v1046
      %1063 = vst [vmem:[%s280 + $0x38] sm:$0xff] %v1047
      %1064 = vst [vmem:[%s280 + $0x40] sm:$0xff] %v1048
      %1065 = vst [vmem:[%s280 + $0x48] sm:$0xff] %v1049
      %1066 = vst [vmem:[%s280 + $0x50] sm:$0xff] %v1050
      %1067 = vst [vmem:[%s280 + $0x58] sm:$0xff] %v1051
      %1068 = vst [vmem:[%s280 + $0x60] sm:$0xff] %v1052
      %1069 = vst [vmem:[%s280 + $0x68] sm:$0xff] %v1053
      %1070 = vst [vmem:[%s280 + $0x70] sm:$0xff] %v1054
      %1071 = vst [vmem:[%s280 + $0x78] sm:$0xff] %v1055
      %s1072 = smul.u32 16, %s18
      %p1073 = scmp.lt.s32.totalorder %s1072, 31
      %s1074 = scalar_select %p1073, %s1072, 31
      %s1075 = smul.addr %s1074, 8
      %s1076 = scalar_lea.vmem %s7, %s1075
      // Predicated region
      $region49: #{generator_forward.1} parent=47 // pred_check
        %p1077 = pneg %p188
      $region50: #{generator_forward.1} parent=47 // pred_check_branch
        %1079 = sbr.rel (%p1077) target = $region52
      $region51: #{generator_forward.1} parent=47 // pred_region
        %s1080 = smul.u32 16, %s18
      $region52: #{generator_forward.1} parent=47 // pred_fallthru
        _
    $region48: #{generator_forward.1} parent=5 // pred_fallthru
      _
    %p1081 = scmp.le.s32.totalorder 2, %s13
    // Predicated region
    $region53: #{generator_forward.1} parent=5 // pred_check
      %p1082 = pneg %p1081
    $region54: #{generator_forward.1} parent=5 // pred_check_branch
      %1084 = sbr.rel (%p1082) target = $region56
    $region55: #{generator_forward.1} parent=5 // pred_region
      %s1085 = ssub.s32 %s13, 2
      // Predicated region
      $region57: #{generator_forward.1} parent=55 // pred_check
        %p1086 = pneg %p194
      $region58: #{generator_forward.1} parent=55 // pred_check_branch
        %1088 = sbr.rel (%p1086) target = $region60
      $region59: #{generator_forward.1} parent=55 // pred_region
        %s1089 = smul.u32 16, %s19
        %p1090 = scmp.lt.s32.totalorder %s1089, 31
        %s1091 = scalar_select %p1090, %s1089, 31
        %s1092 = smul.addr %s1091, 8
        %s1093 = scalar_lea.vmem %s7, %s1092
      $region60: #{generator_forward.1} parent=55 // pred_fallthru
        _
    $region56: #{generator_forward.1} parent=5 // pred_fallthru
      _
  $region6: #{generator_forward.1} parent=0 // loop_footer
    %s17 = sadd.s32 1, %s13
  $region7: #{generator_forward.1} parent=0 // loop_footer_branch
    %12 = sbr.rel target = $region3
  $region8: #{generator_forward.1} parent=0 // loop_exit
    _

</llo_original>
